<compile_context>
chip_gen: v6e
topology: v6e:2x2x1
jax: 0.10.0
libtpu: 0.0.40
codegen_flags: <defaults>
</compile_context>

<pallas_src>
import functools

import jax
import jax.numpy as jnp
from jax.experimental import pallas as pl
from jax.experimental.pallas import tpu as pltpu


def rnn_kernel(xw_ref, whh_ref, wout_ref, bout_ref, out_ref, *, n_classes):
    """Single-invocation RNN kernel.

    xw_ref  : (T, B, H)  precomputed x_t @ W_ih^T + (b_ih + b_hh)
    whh_ref : (H, H)     recurrent weight, pre-transposed
    wout_ref: (H, CP)    output projection, pre-transposed, lane-padded to CP=128
    bout_ref: (1, CP)    output bias, lane-padded
    out_ref : (B, CP)    lane-dense log-probs (only [:, :n_classes] meaningful)
    """
    T, B, H = xw_ref.shape
    CP = out_ref.shape[-1]

    whh = whh_ref[...]  # hoisted: loaded once, reused every step

    # Serial recurrence: h_t = tanh(xw_t + h_{t-1} @ W_hh^T); accumulate sum_t h_t.
    def step(t, carry):
        h, acc_h = carry
        h_new = jnp.tanh(
            xw_ref[t] + jnp.dot(h, whh, preferred_element_type=jnp.float32)
        )
        return h_new, acc_h + h_new

    h0 = jnp.zeros((B, H), jnp.float32)
    acc0 = jnp.zeros((B, H), jnp.float32)
    _, acc_h = jax.lax.fori_loop(0, T, step, (h0, acc0), unroll=True)

    # Hoisted output projection (one MXU pass instead of T):
    #   sum_t (h_t @ W_out^T + b_out) == (sum_t h_t) @ W_out^T + T * b_out
    logits = (
        jnp.dot(acc_h, wout_ref[...], preferred_element_type=jnp.float32)
        + jnp.float32(T) * bout_ref[...]
    )

    # Masked, max-stabilised log-softmax over the true n_classes lanes only.
    col = jax.lax.broadcasted_iota(jnp.int32, (B, CP), 1)
    logits = jnp.where(col < n_classes, logits, jnp.full_like(logits, -1e30))
    m = jnp.max(logits, axis=1, keepdims=True)
    lse = jnp.log(jnp.sum(jnp.exp(logits - m), axis=1, keepdims=True)) + m
    out_ref[...] = (logits - lse).astype(out_ref.dtype)


def rnn_forward(inputs, embedding, w_ih, w_hh, b_ih, b_hh, w_out, b_out):
    """inputs: (T, B) int32 token ids.  Returns (B, n_classes) log-probs."""
    T, B = inputs.shape
    E = embedding.shape[1]
    H = w_hh.shape[0]
    C = w_out.shape[0]
    CP = 128  # lane-dense padded class dimension

    # Embedding lookup (gather glue) stays in plain JAX.
    # TODO(synk): fuse the gather into the kernel via scalar-prefetched token ids
    # once T*B is large enough for the extra HBM round-trip to matter.
    embedded = embedding[inputs].astype(jnp.float32)             # (T, B, E)

    # Batched input projection for all timesteps in one matmul, both RNN biases
    # folded in (no per-step bias broadcast inside the kernel loop).
    xw = (
        embedded.reshape(T * B, E) @ w_ih.T + (b_ih + b_hh)[None, :]
    ).reshape(T, B, H).astype(jnp.float32)                       # (T, B, H)

    whh_t = w_hh.T.astype(jnp.float32)                           # (H, H)
    # Lane-padded output projection / bias (zeros in the padded lanes).
    wout_pad = jnp.zeros((H, CP), jnp.float32).at[:, :C].set(w_out.T)
    bout_pad = jnp.zeros((1, CP), jnp.float32).at[0, :C].set(b_out)

    out_padded = pl.pallas_call(
        functools.partial(rnn_kernel, n_classes=C),
        out_shape=jax.ShapeDtypeStruct((B, CP), jnp.float32),
        grid_spec=pltpu.PrefetchScalarGridSpec(
            num_scalar_prefetch=0,
            grid=(1,),
            in_specs=[
                pl.BlockSpec((T, B, H), lambda i: (0, 0, 0)),     # xw (whole seq)
                pl.BlockSpec((H, H), lambda i: (0, 0)),           # W_hh^T
                pl.BlockSpec((H, CP), lambda i: (0, 0)),          # W_out^T (padded)
                pl.BlockSpec((1, CP), lambda i: (0, 0)),          # b_out (padded)
            ],
            out_specs=pl.BlockSpec((B, CP), lambda i: (0, 0)),
        ),
        compiler_params=pltpu.CompilerParams(
            dimension_semantics=("arbitrary",),  # single sequential step
        ),
    )(xw, whh_t, wout_pad, bout_pad)

    return out_padded[:, :C]


def rnn_forward_ref(inputs, embedding, w_ih, w_hh, b_ih, b_hh, w_out, b_out):
    """Pure-JAX reference matching PyTorch semantics."""
    embedded = embedding[inputs]                      # (T, B, E)
    T, B, _ = embedded.shape
    H = w_hh.shape[0]

    def step(h, x_t):
        h_new = jnp.tanh(x_t @ w_ih.T + b_ih + h @ w_hh.T + b_hh)
        return h_new, h_new

    h0 = jnp.zeros((B, H), jnp.float32)
    _, hs = jax.lax.scan(step, h0, embedded)          # (T, B, H)
    logits = hs @ w_out.T + b_out                     # (T, B, C)
    summed = jnp.sum(logits, axis=0)                  # (B, C)
    return jax.nn.log_softmax(summed, axis=1)


if __name__ == "__main__":
    # Small deterministic setup: vocab=20, embed_dim=16, hidden=32, seq=8, batch=2
    vocab, E, H, T, B, C = 20, 16, 32, 8, 2, 5
    key = jax.random.PRNGKey(0)
    ks = jax.random.split(key, 8)

    bound = 1.0 / jnp.sqrt(H)
    embedding = jax.random.normal(ks[0], (vocab, E), jnp.float32)
    w_ih = jax.random.uniform(ks[1], (H, E), jnp.float32, -bound, bound)
    w_hh = jax.random.uniform(ks[2], (H, H), jnp.float32, -bound, bound)
    b_ih = jax.random.uniform(ks[3], (H,), jnp.float32, -bound, bound)
    b_hh = jax.random.uniform(ks[4], (H,), jnp.float32, -bound, bound)
    w_out = jax.random.uniform(ks[5], (C, H), jnp.float32, -bound, bound)
    b_out = jax.random.uniform(ks[6], (C,), jnp.float32, -bound, bound)

    inputs = jax.random.randint(ks[7], (T, B), 0, vocab, jnp.int32)

    out = rnn_forward(inputs, embedding, w_ih, w_hh, b_ih, b_hh, w_out, b_out)
    out = jax.block_until_ready(out)

    ref = rnn_forward_ref(inputs, embedding, w_ih, w_hh, b_ih, b_hh, w_out, b_out)
    assert out.shape == (B, C)
    assert jnp.allclose(out, ref, atol=1e-5, rtol=1e-5)

    print("KERNEL_OK")
</pallas_src>

<mosaic_0001>
module attributes {stable_mosaic.version = 11 : i64} {
  func.func @rnn_kernel(%arg0: i32, %arg1: memref<8x2x32xf32, #tpu.memory_space<vmem>>, %arg2: memref<32x32xf32, #tpu.memory_space<vmem>>, %arg3: memref<32x128xf32, #tpu.memory_space<vmem>>, %arg4: memref<1x128xf32, #tpu.memory_space<vmem>>, %arg5: memref<2x128xf32, #tpu.memory_space<vmem>>) attributes {dimension_semantics = [#tpu.dimension_semantics<arbitrary>], iteration_bounds = array<i64: 1>, scalar_prefetch = 0 : i64, scratch_operands = 0 : i64, tpu.core_type = #tpu.core_type<tc>, window_params = [{pipeline_mode = #tpu.pipeline_mode<synchronous>, transform_indices = @transform_0, window_bounds = array<i64: 8, 2, 32>}, {pipeline_mode = #tpu.pipeline_mode<synchronous>, transform_indices = @transform_1, window_bounds = array<i64: 32, 32>}, {pipeline_mode = #tpu.pipeline_mode<synchronous>, transform_indices = @transform_2, window_bounds = array<i64: 32, 128>}, {pipeline_mode = #tpu.pipeline_mode<synchronous>, transform_indices = @transform_3, window_bounds = array<i64: 1, 128>}, {pipeline_mode = #tpu.pipeline_mode<synchronous>, transform_indices = @transform_4, window_bounds = array<i64: 2, 128>}]} {
    %c0 = arith.constant 0 : index
    %c0_0 = arith.constant 0 : index
    %0 = vector.load %arg2[%c0, %c0_0] : memref<32x32xf32, #tpu.memory_space<vmem>>, vector<32x32xf32>
    %cst = arith.constant 0.000000e+00 : f32
    %1 = vector.broadcast %cst : f32 to vector<2x32xf32>
    %cst_1 = arith.constant 0.000000e+00 : f32
    %2 = vector.broadcast %cst_1 : f32 to vector<2x32xf32>
    %c0_i32 = arith.constant 0 : i32
    %3 = arith.index_cast %c0_i32 : i32 to index
    %c0_2 = arith.constant 0 : index
    %c0_3 = arith.constant 0 : index
    %4 = vector.load %arg1[%3, %c0_2, %c0_3] : memref<8x2x32xf32, #tpu.memory_space<vmem>>, vector<1x2x32xf32>
    %5 = vector.shape_cast %4 : vector<1x2x32xf32> to vector<2x32xf32>
    %cst_4 = arith.constant dense<0.000000e+00> : vector<2x32xf32>
    %6 = tpu.matmul %1, %0, %cst_4 {dimension_numbers = #tpu.dot_dimension_numbers<[1], [0], [0], [1], [0, 0, 1, 1], [], []>} : vector<2x32xf32>, vector<32x32xf32>, vector<2x32xf32> -> vector<2x32xf32>
    %7 = arith.addf %5, %6 : vector<2x32xf32>
    %8 = math.tanh %7 : vector<2x32xf32>
    %9 = arith.addf %2, %8 : vector<2x32xf32>
    %c1_i32 = arith.constant 1 : i32
    %10 = arith.index_cast %c1_i32 : i32 to index
    %c0_5 = arith.constant 0 : index
    %c0_6 = arith.constant 0 : index
    %11 = vector.load %arg1[%10, %c0_5, %c0_6] : memref<8x2x32xf32, #tpu.memory_space<vmem>>, vector<1x2x32xf32>
    %12 = vector.shape_cast %11 : vector<1x2x32xf32> to vector<2x32xf32>
    %cst_7 = arith.constant dense<0.000000e+00> : vector<2x32xf32>
    %13 = tpu.matmul %8, %0, %cst_7 {dimension_numbers = #tpu.dot_dimension_numbers<[1], [0], [0], [1], [0, 0, 1, 1], [], []>} : vector<2x32xf32>, vector<32x32xf32>, vector<2x32xf32> -> vector<2x32xf32>
    %14 = arith.addf %12, %13 : vector<2x32xf32>
    %15 = math.tanh %14 : vector<2x32xf32>
    %16 = arith.addf %9, %15 : vector<2x32xf32>
    %c2_i32 = arith.constant 2 : i32
    %17 = arith.index_cast %c2_i32 : i32 to index
    %c0_8 = arith.constant 0 : index
    %c0_9 = arith.constant 0 : index
    %18 = vector.load %arg1[%17, %c0_8, %c0_9] : memref<8x2x32xf32, #tpu.memory_space<vmem>>, vector<1x2x32xf32>
    %19 = vector.shape_cast %18 : vector<1x2x32xf32> to vector<2x32xf32>
    %cst_10 = arith.constant dense<0.000000e+00> : vector<2x32xf32>
    %20 = tpu.matmul %15, %0, %cst_10 {dimension_numbers = #tpu.dot_dimension_numbers<[1], [0], [0], [1], [0, 0, 1, 1], [], []>} : vector<2x32xf32>, vector<32x32xf32>, vector<2x32xf32> -> vector<2x32xf32>
    %21 = arith.addf %19, %20 : vector<2x32xf32>
    %22 = math.tanh %21 : vector<2x32xf32>
    %23 = arith.addf %16, %22 : vector<2x32xf32>
    %c3_i32 = arith.constant 3 : i32
    %24 = arith.index_cast %c3_i32 : i32 to index
    %c0_11 = arith.constant 0 : index
    %c0_12 = arith.constant 0 : index
    %25 = vector.load %arg1[%24, %c0_11, %c0_12] : memref<8x2x32xf32, #tpu.memory_space<vmem>>, vector<1x2x32xf32>
    %26 = vector.shape_cast %25 : vector<1x2x32xf32> to vector<2x32xf32>
    %cst_13 = arith.constant dense<0.000000e+00> : vector<2x32xf32>
    %27 = tpu.matmul %22, %0, %cst_13 {dimension_numbers = #tpu.dot_dimension_numbers<[1], [0], [0], [1], [0, 0, 1, 1], [], []>} : vector<2x32xf32>, vector<32x32xf32>, vector<2x32xf32> -> vector<2x32xf32>
    %28 = arith.addf %26, %27 : vector<2x32xf32>
    %29 = math.tanh %28 : vector<2x32xf32>
    %30 = arith.addf %23, %29 : vector<2x32xf32>
    %c4_i32 = arith.constant 4 : i32
    %31 = arith.index_cast %c4_i32 : i32 to index
    %c0_14 = arith.constant 0 : index
    %c0_15 = arith.constant 0 : index
    %32 = vector.load %arg1[%31, %c0_14, %c0_15] : memref<8x2x32xf32, #tpu.memory_space<vmem>>, vector<1x2x32xf32>
    %33 = vector.shape_cast %32 : vector<1x2x32xf32> to vector<2x32xf32>
    %cst_16 = arith.constant dense<0.000000e+00> : vector<2x32xf32>
    %34 = tpu.matmul %29, %0, %cst_16 {dimension_numbers = #tpu.dot_dimension_numbers<[1], [0], [0], [1], [0, 0, 1, 1], [], []>} : vector<2x32xf32>, vector<32x32xf32>, vector<2x32xf32> -> vector<2x32xf32>
    %35 = arith.addf %33, %34 : vector<2x32xf32>
    %36 = math.tanh %35 : vector<2x32xf32>
    %37 = arith.addf %30, %36 : vector<2x32xf32>
    %c5_i32 = arith.constant 5 : i32
    %38 = arith.index_cast %c5_i32 : i32 to index
    %c0_17 = arith.constant 0 : index
    %c0_18 = arith.constant 0 : index
    %39 = vector.load %arg1[%38, %c0_17, %c0_18] : memref<8x2x32xf32, #tpu.memory_space<vmem>>, vector<1x2x32xf32>
    %40 = vector.shape_cast %39 : vector<1x2x32xf32> to vector<2x32xf32>
    %cst_19 = arith.constant dense<0.000000e+00> : vector<2x32xf32>
    %41 = tpu.matmul %36, %0, %cst_19 {dimension_numbers = #tpu.dot_dimension_numbers<[1], [0], [0], [1], [0, 0, 1, 1], [], []>} : vector<2x32xf32>, vector<32x32xf32>, vector<2x32xf32> -> vector<2x32xf32>
    %42 = arith.addf %40, %41 : vector<2x32xf32>
    %43 = math.tanh %42 : vector<2x32xf32>
    %44 = arith.addf %37, %43 : vector<2x32xf32>
    %c6_i32 = arith.constant 6 : i32
    %45 = arith.index_cast %c6_i32 : i32 to index
    %c0_20 = arith.constant 0 : index
    %c0_21 = arith.constant 0 : index
    %46 = vector.load %arg1[%45, %c0_20, %c0_21] : memref<8x2x32xf32, #tpu.memory_space<vmem>>, vector<1x2x32xf32>
    %47 = vector.shape_cast %46 : vector<1x2x32xf32> to vector<2x32xf32>
    %cst_22 = arith.constant dense<0.000000e+00> : vector<2x32xf32>
    %48 = tpu.matmul %43, %0, %cst_22 {dimension_numbers = #tpu.dot_dimension_numbers<[1], [0], [0], [1], [0, 0, 1, 1], [], []>} : vector<2x32xf32>, vector<32x32xf32>, vector<2x32xf32> -> vector<2x32xf32>
    %49 = arith.addf %47, %48 : vector<2x32xf32>
    %50 = math.tanh %49 : vector<2x32xf32>
    %51 = arith.addf %44, %50 : vector<2x32xf32>
    %c7_i32 = arith.constant 7 : i32
    %52 = arith.index_cast %c7_i32 : i32 to index
    %c0_23 = arith.constant 0 : index
    %c0_24 = arith.constant 0 : index
    %53 = vector.load %arg1[%52, %c0_23, %c0_24] : memref<8x2x32xf32, #tpu.memory_space<vmem>>, vector<1x2x32xf32>
    %54 = vector.shape_cast %53 : vector<1x2x32xf32> to vector<2x32xf32>
    %cst_25 = arith.constant dense<0.000000e+00> : vector<2x32xf32>
    %55 = tpu.matmul %50, %0, %cst_25 {dimension_numbers = #tpu.dot_dimension_numbers<[1], [0], [0], [1], [0, 0, 1, 1], [], []>} : vector<2x32xf32>, vector<32x32xf32>, vector<2x32xf32> -> vector<2x32xf32>
    %56 = arith.addf %54, %55 : vector<2x32xf32>
    %57 = math.tanh %56 : vector<2x32xf32>
    %58 = arith.addf %51, %57 : vector<2x32xf32>
    %c8_i32 = arith.constant 8 : i32
    %c0_26 = arith.constant 0 : index
    %c0_27 = arith.constant 0 : index
    %59 = vector.load %arg3[%c0_26, %c0_27] : memref<32x128xf32, #tpu.memory_space<vmem>>, vector<32x128xf32>
    %cst_28 = arith.constant dense<0.000000e+00> : vector<2x128xf32>
    %60 = tpu.matmul %58, %59, %cst_28 {dimension_numbers = #tpu.dot_dimension_numbers<[1], [0], [0], [1], [0, 0, 1, 1], [], []>} : vector<2x32xf32>, vector<32x128xf32>, vector<2x128xf32> -> vector<2x128xf32>
    %c0_29 = arith.constant 0 : index
    %c0_30 = arith.constant 0 : index
    %61 = vector.load %arg4[%c0_29, %c0_30] : memref<1x128xf32, #tpu.memory_space<vmem>>, vector<1x128xf32>
    %cst_31 = arith.constant 8.000000e+00 : f32
    %62 = vector.broadcast %cst_31 : f32 to vector<1x128xf32>
    %63 = arith.mulf %62, %61 : vector<1x128xf32>
    %64 = vector.broadcast %63 : vector<1x128xf32> to vector<2x128xf32>
    %65 = arith.addf %60, %64 : vector<2x128xf32>
    %66 = tpu.iota {dimensions = array<i32: 1>} : vector<2x128xi32>
    %c5_i32_32 = arith.constant 5 : i32
    %67 = vector.broadcast %c5_i32_32 : i32 to vector<2x128xi32>
    %68 = arith.cmpi slt, %66, %67 : vector<2x128xi32>
    %cst_33 = arith.constant -1.000000e+30 : f32
    %69 = vector.broadcast %cst_33 : f32 to vector<2x128xf32>
    %70 = arith.select %68, %65, %69 : vector<2x128xi1>, vector<2x128xf32>
    %cst_34 = arith.constant dense<0xFF800000> : vector<2xf32>
    %71 = vector.multi_reduction <maximumf>, %70, %cst_34 [1] : vector<2x128xf32> to vector<2xf32>
    %72 = vector.shape_cast %71 : vector<2xf32> to vector<2x1xf32>
    %73 = vector.broadcast %72 : vector<2x1xf32> to vector<2x128xf32>
    %74 = arith.subf %70, %73 : vector<2x128xf32>
    %75 = math.exp %74 : vector<2x128xf32>
    %cst_35 = arith.constant dense<0.000000e+00> : vector<2xf32>
    %76 = vector.multi_reduction <add>, %75, %cst_35 [1] : vector<2x128xf32> to vector<2xf32>
    %77 = vector.shape_cast %76 : vector<2xf32> to vector<2x1xf32>
    %78 = math.log %77 : vector<2x1xf32>
    %79 = arith.addf %78, %72 : vector<2x1xf32>
    %80 = vector.broadcast %79 : vector<2x1xf32> to vector<2x128xf32>
    %81 = arith.subf %70, %80 : vector<2x128xf32>
    %c0_36 = arith.constant 0 : index
    %c0_37 = arith.constant 0 : index
    %82 = vector.load %arg5[%c0_36, %c0_37] : memref<2x128xf32, #tpu.memory_space<vmem>>, vector<2x128xf32>
    tpu.vector_store %arg5[%c0_36, %c0_37], %81 {strides = array<i32>} : memref<2x128xf32, #tpu.memory_space<vmem>>, vector<2x128xf32>,
    return
  }
  func.func @transform_0(%arg0: i32) -> (i32, i32, i32) {
    %c0_i32 = arith.constant 0 : i32
    %c0_i32_0 = arith.constant 0 : i32
    %c0_i32_1 = arith.constant 0 : i32
    %c0_i32_2 = arith.constant 0 : i32
    return %c0_i32, %c0_i32_0, %c0_i32_1 : i32, i32, i32
  }
  func.func @transform_1(%arg0: i32) -> (i32, i32) {
    %c0_i32 = arith.constant 0 : i32
    %c0_i32_0 = arith.constant 0 : i32
    %c0_i32_1 = arith.constant 0 : i32
    return %c0_i32, %c0_i32_0 : i32, i32
  }
  func.func @transform_2(%arg0: i32) -> (i32, i32) {
    %c0_i32 = arith.constant 0 : i32
    %c0_i32_0 = arith.constant 0 : i32
    %c0_i32_1 = arith.constant 0 : i32
    return %c0_i32, %c0_i32_0 : i32, i32
  }
  func.func @transform_3(%arg0: i32) -> (i32, i32) {
    %c0_i32 = arith.constant 0 : i32
    %c0_i32_0 = arith.constant 0 : i32
    %c0_i32_1 = arith.constant 0 : i32
    return %c0_i32, %c0_i32_0 : i32, i32
  }
  func.func @transform_4(%arg0: i32) -> (i32, i32) {
    %c0_i32 = arith.constant 0 : i32
    %c0_i32_0 = arith.constant 0 : i32
    %c0_i32_1 = arith.constant 0 : i32
    return %c0_i32, %c0_i32_0 : i32, i32
  }
}

</mosaic_0001>

<llo_original>
// kernel: tpu_custom_call.1
$region0: #{tpu_custom_call.1}
  #allocation0 [shape = 'u32[]', space=smem, size = 0x4, offset = 0x4, fixed_abs, tag = 'smem constant byte address 0x4 - core index']
  #allocation1 [shape = 'u32[144,128]{1,0:T(1,128)}', space=vmem, size = 0x12000, scoped, tag = 'internal scratch']
  %s0 = inlined_call_operand.hbm [shape: f32[8,2,32], index: 0, kind: input, shape index: {}]
  %s1 = inlined_call_operand.hbm [shape: f32[32,32], index: 1, kind: input, shape index: {}]
  %s2 = inlined_call_operand.hbm [shape: f32[32,128], index: 2, kind: input, shape index: {}]
  %s3 = inlined_call_operand.vmem [shape: f32[1,128], index: 3, kind: input, shape index: {}]
  %s4 = inlined_call_operand.hbm [shape: f32[2,128], index: 4, kind: output, shape index: {}]
  %s5 = sld [smem:[#allocation0]]
  $region38: #{tpu_custom_call.1} parent=0
    _
  %s7 = ssub.s32 1, %s5
  %s8 = scalar_select 0, %s7, %s5
  $region1: #{tpu_custom_call.1} parent=0
    #allocation2 [shape = 'u8[8192]{0}', space=vmem, size = 0x2000, scoped, tag = 'input window, operand 0, single buffered']
    #allocation3 [shape = 's32[1]{0}', space=sflag, size = 0x4, scoped, tag = 'scoped memory for tpu_custom_call.1']
    #allocation4 [shape = 's32[1]{0}', space=sflag, size = 0x4, scoped, tag = 'scoped memory for tpu_custom_call.1']
    #allocation5 [shape = 'u8[16384]{0}', space=vmem, size = 0x4000, scoped, tag = 'input window, operand 1, single buffered']
    #allocation6 [shape = 's32[1]{0}', space=sflag, size = 0x4, scoped, tag = 'scoped memory for tpu_custom_call.1']
    #allocation7 [shape = 'u8[16384]{0}', space=vmem, size = 0x4000, scoped, tag = 'input window, operand 2, single buffered']
    #allocation8 [shape = 'u8[1024]{0}', space=vmem, size = 0x400, scoped, tag = 'output window, operand 0, single buffered']
    %9 = vsyncpa [#allocation3], 0
    %10 = vsyncpa [#allocation6], 0
    %11 = vsyncpa [#allocation4], 0
    // Predicated region
    $region2: #{tpu_custom_call.1} parent=1 // pred_check
      _
    $region3: #{tpu_custom_call.1} parent=1 // pred_check_branch
      %13 = sbr.rel (0) target = $region5
    $region4: #{tpu_custom_call.1} parent=1 // pred_region
      %s15 = ssub.s32 256, 256
      %16 = vsyncadd [#allocation3], %s15
      %s17 = sshll.u32 [#allocation2], 4
      %s18 = int_to_ptr.vmem [resolvable:$true] %s17
      %23 = dma.hbm_to_vmem [thread:$0]  %s0, 256, %s18, [#allocation3], 32, 32, 2
    $region5: #{tpu_custom_call.1} parent=1 // pred_fallthru
      _
    // Predicated region
    $region6: #{tpu_custom_call.1} parent=1 // pred_check
      _
    $region7: #{tpu_custom_call.1} parent=1 // pred_check_branch
      %25 = sbr.rel (0) target = $region9
    $region8: #{tpu_custom_call.1} parent=1 // pred_region
      %s27 = ssub.s32 512, 512
      %28 = vsyncadd [#allocation6], %s27
      %s29 = sshll.u32 [#allocation5], 4
      %s30 = int_to_ptr.vmem [resolvable:$true] %s29
      %35 = dma.hbm_to_vmem [thread:$0]  %s1, 512, %s30, [#allocation6], 128, 128, 8
    $region9: #{tpu_custom_call.1} parent=1 // pred_fallthru
      _
    // Predicated region
    $region10: #{tpu_custom_call.1} parent=1 // pred_check
      _
    $region11: #{tpu_custom_call.1} parent=1 // pred_check_branch
      %37 = sbr.rel (0) target = $region13
    $region12: #{tpu_custom_call.1} parent=1 // pred_region
      %s39 = ssub.s32 512, 512
      %40 = vsyncadd [#allocation6], %s39
      %s41 = sshll.u32 [#allocation7], 4
      %s42 = int_to_ptr.vmem [resolvable:$true] %s41
      %47 = dma.hbm_to_vmem [thread:$0]  %s2, 512, %s42, [#allocation6], 128, 128, 8
    $region13: #{tpu_custom_call.1} parent=1 // pred_fallthru
      _
    // Predicated region
    $region14: #{tpu_custom_call.1} parent=1 // pred_check
      _
    $region15: #{tpu_custom_call.1} parent=1 // pred_check_branch
      %49 = sbr.rel (0) target = $region17
    $region16: #{tpu_custom_call.1} parent=1 // pred_region
      _
    $region17: #{tpu_custom_call.1} parent=1 // pred_fallthru
      _
    // Predicated region
    $region18: #{tpu_custom_call.1} parent=1 // pred_check
      _
    $region19: #{tpu_custom_call.1} parent=1 // pred_check_branch
      %51 = sbr.rel (0) target = $region21
    $region20: #{tpu_custom_call.1} parent=1 // pred_region
      %52 = dma.done [#allocation3], 256
    $region21: #{tpu_custom_call.1} parent=1 // pred_fallthru
      _
    // Predicated region
    $region22: #{tpu_custom_call.1} parent=1 // pred_check
      _
    $region23: #{tpu_custom_call.1} parent=1 // pred_check_branch
      %54 = sbr.rel (0) target = $region25
    $region24: #{tpu_custom_call.1} parent=1 // pred_region
      %55 = dma.done [#allocation6], 512
    $region25: #{tpu_custom_call.1} parent=1 // pred_fallthru
      _
    // Predicated region
    $region26: #{tpu_custom_call.1} parent=1 // pred_check
      _
    $region27: #{tpu_custom_call.1} parent=1 // pred_check_branch
      %57 = sbr.rel (0) target = $region29
    $region28: #{tpu_custom_call.1} parent=1 // pred_region
      %58 = dma.done [#allocation6], 512
    $region29: #{tpu_custom_call.1} parent=1 // pred_fallthru
      _
    %v59 = vld [vmem:[#allocation5] sm:$0xff]
    %v60 = vld [vmem:[#allocation5 + $0x8] sm:$0xff]
    %v61 = vld [vmem:[#allocation5 + $0x10] sm:$0xff]
    %v62 = vld [vmem:[#allocation5 + $0x18] sm:$0xff]
    %v63 = vld [vmem:[#allocation2] sm:$0x3]
    %vm64 = vcmask 261120
    %v66 = vsel %vm64, 0.0, 0
    %68 = vmatprep.subr.mxu0 0.0
    %69 = vmatpush1.msra.mxu0 0.0
    %70 = vmatprep.subr.mxu0 0.0
    %71 = vmatpush1.msra.mxu0 0.0
    %72 = vmatprep.subr.mxu0 0.0
    %73 = vmatpush1.msra.mxu0 0.0
    %74 = vmatprep.subr.mxu0 0.0
    %75 = vmatpush1.msra.mxu0 0.0
    %76 = vmatprep.subr.mxu0 0.0
    %77 = vmatpush1.msra.mxu0 0.0
    %78 = vmatprep.subr.mxu0 0.0
    %79 = vmatpush1.msra.mxu0 0.0
    %80 = vmatprep.subr.mxu0 0.0
    %81 = vmatpush1.msra.mxu0 0.0
    %82 = vmatprep.subr.mxu0 0.0
    %83 = vmatpush1.msra.mxu0 0.0
    %84 = vmatprep.subr.mxu0 0.0
    %85 = vmatpush1.msra.mxu0 0.0
    %86 = vmatprep.subr.mxu0 0.0
    %87 = vmatpush1.msra.mxu0 0.0
    %88 = vmatprep.subr.mxu0 0.0
    %89 = vmatpush1.msra.mxu0 0.0
    %90 = vmatprep.subr.mxu0 0.0
    %91 = vmatpush1.msra.mxu0 0.0
    %92 = vmatprep.subr.mxu0 0.0
    %93 = vmatpush1.msra.mxu0 %v62
    %94 = vmatprep.subr.mxu0 0.0
    %95 = vmatpush1.msra.mxu0 %v61
    %96 = vmatprep.subr.mxu0 0.0
    %97 = vmatpush1.msra.mxu0 %v60
    %98 = vmatprep.subr.mxu0 0.0
    %99 = vmatpush1.msra.mxu0 %v59
    %100 = vmatprep.subr.mxu0 0.0
    %101 = vmatpush2.msra.mxu0 0.0
    %102 = vmatprep.subr.mxu0 0.0
    %103 = vmatpush2.msra.mxu0 0.0
    %104 = vmatprep.subr.mxu0 0.0
    %105 = vmatpush2.msra.mxu0 0.0
    %106 = vmatprep.subr.mxu0 0.0
    %107 = vmatpush2.msra.mxu0 0.0
    %108 = vmatprep.subr.mxu0 0.0
    %109 = vmatpush2.msra.mxu0 0.0
    %110 = vmatprep.subr.mxu0 0.0
    %111 = vmatpush2.msra.mxu0 0.0
    %112 = vmatprep.subr.mxu0 0.0
    %113 = vmatpush2.msra.mxu0 0.0
    %114 = vmatprep.subr.mxu0 0.0
    %115 = vmatpush2.msra.mxu0 0.0
    %116 = vmatprep.subr.mxu0 0.0
    %117 = vmatpush2.msra.mxu0 0.0
    %118 = vmatprep.subr.mxu0 0.0
    %119 = vmatpush2.msra.mxu0 0.0
    %120 = vmatprep.subr.mxu0 0.0
    %121 = vmatpush2.msra.mxu0 0.0
    %122 = vmatprep.subr.mxu0 0.0
    %123 = vmatpush2.msra.mxu0 0.0
    %124 = vmatprep.subr.mxu0 0.0
    %125 = vmatpush2.msra.mxu0 0.0
    %126 = vmatprep.subr.mxu0 0.0
    %127 = vmatpush2.msra.mxu0 0.0
    %128 = vmatprep.subr.mxu0 0.0
    %129 = vmatpush2.msra.mxu0 0.0
    %130 = vmatprep.subr.mxu0 0.0
    %131 = vmatpush2.msra.mxu0 0.0
    %132 = vmatprep.mubr.f32.mxu0 0.0
    %133 = vmatmul.mubr.f32.gmra.mxu0 %v66
    %v134 = vpop.f32.mrf.mxu0
    %v135 = vadd.f32 0.0, %v134
    %v136 = vpop.f32.mrf.mxu0
    %137 = vdwg.mxu0
    %v138 = vadd.f32 %v63, %v135
    %v139 = vtanh.pop %v138
    %v140 = vadd.f32 %v139, 0.0
    %s141 = scalar_lea.vmem [#allocation2], 2
    %v142 = vld [vmem:[%s141] sm:$0x3]
    %v144 = vsel %vm64, %v139, 0
    %146 = vmatprep.subr.mxu0 0.0
    %147 = vmatpush1.msra.mxu0 0.0
    %148 = vmatprep.subr.mxu0 0.0
    %149 = vmatpush1.msra.mxu0 0.0
    %150 = vmatprep.subr.mxu0 0.0
    %151 = vmatpush1.msra.mxu0 0.0
    %152 = vmatprep.subr.mxu0 0.0
    %153 = vmatpush1.msra.mxu0 0.0
    %154 = vmatprep.subr.mxu0 0.0
    %155 = vmatpush1.msra.mxu0 0.0
    %156 = vmatprep.subr.mxu0 0.0
    %157 = vmatpush1.msra.mxu0 0.0
    %158 = vmatprep.subr.mxu0 0.0
    %159 = vmatpush1.msra.mxu0 0.0
    %160 = vmatprep.subr.mxu0 0.0
    %161 = vmatpush1.msra.mxu0 0.0
    %162 = vmatprep.subr.mxu0 0.0
    %163 = vmatpush1.msra.mxu0 0.0
    %164 = vmatprep.subr.mxu0 0.0
    %165 = vmatpush1.msra.mxu0 0.0
    %166 = vmatprep.subr.mxu0 0.0
    %167 = vmatpush1.msra.mxu0 0.0
    %168 = vmatprep.subr.mxu0 0.0
    %169 = vmatpush1.msra.mxu0 0.0
    %170 = vmatprep.subr.mxu0 0.0
    %171 = vmatpush1.msra.mxu0 %v62
    %172 = vmatprep.subr.mxu0 0.0
    %173 = vmatpush1.msra.mxu0 %v61
    %174 = vmatprep.subr.mxu0 0.0
    %175 = vmatpush1.msra.mxu0 %v60
    %176 = vmatprep.subr.mxu0 0.0
    %177 = vmatpush1.msra.mxu0 %v59
    %178 = vmatprep.subr.mxu0 0.0
    %179 = vmatpush2.msra.mxu0 0.0
    %180 = vmatprep.subr.mxu0 0.0
    %181 = vmatpush2.msra.mxu0 0.0
    %182 = vmatprep.subr.mxu0 0.0
    %183 = vmatpush2.msra.mxu0 0.0
    %184 = vmatprep.subr.mxu0 0.0
    %185 = vmatpush2.msra.mxu0 0.0
    %186 = vmatprep.subr.mxu0 0.0
    %187 = vmatpush2.msra.mxu0 0.0
    %188 = vmatprep.subr.mxu0 0.0
    %189 = vmatpush2.msra.mxu0 0.0
    %190 = vmatprep.subr.mxu0 0.0
    %191 = vmatpush2.msra.mxu0 0.0
    %192 = vmatprep.subr.mxu0 0.0
    %193 = vmatpush2.msra.mxu0 0.0
    %194 = vmatprep.subr.mxu0 0.0
    %195 = vmatpush2.msra.mxu0 0.0
    %196 = vmatprep.subr.mxu0 0.0
    %197 = vmatpush2.msra.mxu0 0.0
    %198 = vmatprep.subr.mxu0 0.0
    %199 = vmatpush2.msra.mxu0 0.0
    %200 = vmatprep.subr.mxu0 0.0
    %201 = vmatpush2.msra.mxu0 0.0
    %202 = vmatprep.subr.mxu0 0.0
    %203 = vmatpush2.msra.mxu0 0.0
    %204 = vmatprep.subr.mxu0 0.0
    %205 = vmatpush2.msra.mxu0 0.0
    %206 = vmatprep.subr.mxu0 0.0
    %207 = vmatpush2.msra.mxu0 0.0
    %208 = vmatprep.subr.mxu0 0.0
    %209 = vmatpush2.msra.mxu0 0.0
    %210 = vmatprep.mubr.f32.mxu0 0.0
    %211 = vmatmul.mubr.f32.gmra.mxu0 %v144
    %v212 = vpop.f32.mrf.mxu0
    %v213 = vadd.f32 0.0, %v212
    %v214 = vpop.f32.mrf.mxu0
    %215 = vdwg.mxu0
    %v216 = vadd.f32 %v142, %v213
    %v217 = vtanh.pop %v216
    %v218 = vadd.f32 %v140, %v217
    %s219 = scalar_lea.vmem [#allocation2], 4
    %v220 = vld [vmem:[%s219] sm:$0x3]
    %v222 = vsel %vm64, %v217, 0
    %224 = vmatprep.subr.mxu0 0.0
    %225 = vmatpush1.msra.mxu0 0.0
    %226 = vmatprep.subr.mxu0 0.0
    %227 = vmatpush1.msra.mxu0 0.0
    %228 = vmatprep.subr.mxu0 0.0
    %229 = vmatpush1.msra.mxu0 0.0
    %230 = vmatprep.subr.mxu0 0.0
    %231 = vmatpush1.msra.mxu0 0.0
    %232 = vmatprep.subr.mxu0 0.0
    %233 = vmatpush1.msra.mxu0 0.0
    %234 = vmatprep.subr.mxu0 0.0
    %235 = vmatpush1.msra.mxu0 0.0
    %236 = vmatprep.subr.mxu0 0.0
    %237 = vmatpush1.msra.mxu0 0.0
    %238 = vmatprep.subr.mxu0 0.0
    %239 = vmatpush1.msra.mxu0 0.0
    %240 = vmatprep.subr.mxu0 0.0
    %241 = vmatpush1.msra.mxu0 0.0
    %242 = vmatprep.subr.mxu0 0.0
    %243 = vmatpush1.msra.mxu0 0.0
    %244 = vmatprep.subr.mxu0 0.0
    %245 = vmatpush1.msra.mxu0 0.0
    %246 = vmatprep.subr.mxu0 0.0
    %247 = vmatpush1.msra.mxu0 0.0
    %248 = vmatprep.subr.mxu0 0.0
    %249 = vmatpush1.msra.mxu0 %v62
    %250 = vmatprep.subr.mxu0 0.0
    %251 = vmatpush1.msra.mxu0 %v61
    %252 = vmatprep.subr.mxu0 0.0
    %253 = vmatpush1.msra.mxu0 %v60
    %254 = vmatprep.subr.mxu0 0.0
    %255 = vmatpush1.msra.mxu0 %v59
    %256 = vmatprep.subr.mxu0 0.0
    %257 = vmatpush2.msra.mxu0 0.0
    %258 = vmatprep.subr.mxu0 0.0
    %259 = vmatpush2.msra.mxu0 0.0
    %260 = vmatprep.subr.mxu0 0.0
    %261 = vmatpush2.msra.mxu0 0.0
    %262 = vmatprep.subr.mxu0 0.0
    %263 = vmatpush2.msra.mxu0 0.0
    %264 = vmatprep.subr.mxu0 0.0
    %265 = vmatpush2.msra.mxu0 0.0
    %266 = vmatprep.subr.mxu0 0.0
    %267 = vmatpush2.msra.mxu0 0.0
    %268 = vmatprep.subr.mxu0 0.0
    %269 = vmatpush2.msra.mxu0 0.0
    %270 = vmatprep.subr.mxu0 0.0
    %271 = vmatpush2.msra.mxu0 0.0
    %272 = vmatprep.subr.mxu0 0.0
    %273 = vmatpush2.msra.mxu0 0.0
    %274 = vmatprep.subr.mxu0 0.0
    %275 = vmatpush2.msra.mxu0 0.0
    %276 = vmatprep.subr.mxu0 0.0
    %277 = vmatpush2.msra.mxu0 0.0
    %278 = vmatprep.subr.mxu0 0.0
    %279 = vmatpush2.msra.mxu0 0.0
    %280 = vmatprep.subr.mxu0 0.0
    %281 = vmatpush2.msra.mxu0 0.0
    %282 = vmatprep.subr.mxu0 0.0
    %283 = vmatpush2.msra.mxu0 0.0
    %284 = vmatprep.subr.mxu0 0.0
    %285 = vmatpush2.msra.mxu0 0.0
    %286 = vmatprep.subr.mxu0 0.0
    %287 = vmatpush2.msra.mxu0 0.0
    %288 = vmatprep.mubr.f32.mxu0 0.0
    %289 = vmatmul.mubr.f32.gmra.mxu0 %v222
    %v290 = vpop.f32.mrf.mxu0
    %v291 = vadd.f32 0.0, %v290
    %v292 = vpop.f32.mrf.mxu0
    %293 = vdwg.mxu0
    %v294 = vadd.f32 %v220, %v291
    %v295 = vtanh.pop %v294
    %v296 = vadd.f32 %v218, %v295
    %s297 = scalar_lea.vmem [#allocation2], 6
    %v298 = vld [vmem:[%s297] sm:$0x3]
    %v300 = vsel %vm64, %v295, 0
    %302 = vmatprep.subr.mxu0 0.0
    %303 = vmatpush1.msra.mxu0 0.0
    %304 = vmatprep.subr.mxu0 0.0
    %305 = vmatpush1.msra.mxu0 0.0
    %306 = vmatprep.subr.mxu0 0.0
    %307 = vmatpush1.msra.mxu0 0.0
    %308 = vmatprep.subr.mxu0 0.0
    %309 = vmatpush1.msra.mxu0 0.0
    %310 = vmatprep.subr.mxu0 0.0
    %311 = vmatpush1.msra.mxu0 0.0
    %312 = vmatprep.subr.mxu0 0.0
    %313 = vmatpush1.msra.mxu0 0.0
    %314 = vmatprep.subr.mxu0 0.0
    %315 = vmatpush1.msra.mxu0 0.0
    %316 = vmatprep.subr.mxu0 0.0
    %317 = vmatpush1.msra.mxu0 0.0
    %318 = vmatprep.subr.mxu0 0.0
    %319 = vmatpush1.msra.mxu0 0.0
    %320 = vmatprep.subr.mxu0 0.0
    %321 = vmatpush1.msra.mxu0 0.0
    %322 = vmatprep.subr.mxu0 0.0
    %323 = vmatpush1.msra.mxu0 0.0
    %324 = vmatprep.subr.mxu0 0.0
    %325 = vmatpush1.msra.mxu0 0.0
    %326 = vmatprep.subr.mxu0 0.0
    %327 = vmatpush1.msra.mxu0 %v62
    %328 = vmatprep.subr.mxu0 0.0
    %329 = vmatpush1.msra.mxu0 %v61
    %330 = vmatprep.subr.mxu0 0.0
    %331 = vmatpush1.msra.mxu0 %v60
    %332 = vmatprep.subr.mxu0 0.0
    %333 = vmatpush1.msra.mxu0 %v59
    %334 = vmatprep.subr.mxu0 0.0
    %335 = vmatpush2.msra.mxu0 0.0
    %336 = vmatprep.subr.mxu0 0.0
    %337 = vmatpush2.msra.mxu0 0.0
    %338 = vmatprep.subr.mxu0 0.0
    %339 = vmatpush2.msra.mxu0 0.0
    %340 = vmatprep.subr.mxu0 0.0
    %341 = vmatpush2.msra.mxu0 0.0
    %342 = vmatprep.subr.mxu0 0.0
    %343 = vmatpush2.msra.mxu0 0.0
    %344 = vmatprep.subr.mxu0 0.0
    %345 = vmatpush2.msra.mxu0 0.0
    %346 = vmatprep.subr.mxu0 0.0
    %347 = vmatpush2.msra.mxu0 0.0
    %348 = vmatprep.subr.mxu0 0.0
    %349 = vmatpush2.msra.mxu0 0.0
    %350 = vmatprep.subr.mxu0 0.0
    %351 = vmatpush2.msra.mxu0 0.0
    %352 = vmatprep.subr.mxu0 0.0
    %353 = vmatpush2.msra.mxu0 0.0
    %354 = vmatprep.subr.mxu0 0.0
    %355 = vmatpush2.msra.mxu0 0.0
    %356 = vmatprep.subr.mxu0 0.0
    %357 = vmatpush2.msra.mxu0 0.0
    %358 = vmatprep.subr.mxu0 0.0
    %359 = vmatpush2.msra.mxu0 0.0
    %360 = vmatprep.subr.mxu0 0.0
    %361 = vmatpush2.msra.mxu0 0.0
    %362 = vmatprep.subr.mxu0 0.0
    %363 = vmatpush2.msra.mxu0 0.0
    %364 = vmatprep.subr.mxu0 0.0
    %365 = vmatpush2.msra.mxu0 0.0
    %366 = vmatprep.mubr.f32.mxu0 0.0
    %367 = vmatmul.mubr.f32.gmra.mxu0 %v300
    %v368 = vpop.f32.mrf.mxu0
    %v369 = vadd.f32 0.0, %v368
    %v370 = vpop.f32.mrf.mxu0
    %371 = vdwg.mxu0
    %v372 = vadd.f32 %v298, %v369
    %v373 = vtanh.pop %v372
    %v374 = vadd.f32 %v296, %v373
    %s375 = scalar_lea.vmem [#allocation2], 8
    %v376 = vld [vmem:[%s375] sm:$0x3]
    %v378 = vsel %vm64, %v373, 0
    %380 = vmatprep.subr.mxu0 0.0
    %381 = vmatpush1.msra.mxu0 0.0
    %382 = vmatprep.subr.mxu0 0.0
    %383 = vmatpush1.msra.mxu0 0.0
    %384 = vmatprep.subr.mxu0 0.0
    %385 = vmatpush1.msra.mxu0 0.0
    %386 = vmatprep.subr.mxu0 0.0
    %387 = vmatpush1.msra.mxu0 0.0
    %388 = vmatprep.subr.mxu0 0.0
    %389 = vmatpush1.msra.mxu0 0.0
    %390 = vmatprep.subr.mxu0 0.0
    %391 = vmatpush1.msra.mxu0 0.0
    %392 = vmatprep.subr.mxu0 0.0
    %393 = vmatpush1.msra.mxu0 0.0
    %394 = vmatprep.subr.mxu0 0.0
    %395 = vmatpush1.msra.mxu0 0.0
    %396 = vmatprep.subr.mxu0 0.0
    %397 = vmatpush1.msra.mxu0 0.0
    %398 = vmatprep.subr.mxu0 0.0
    %399 = vmatpush1.msra.mxu0 0.0
    %400 = vmatprep.subr.mxu0 0.0
    %401 = vmatpush1.msra.mxu0 0.0
    %402 = vmatprep.subr.mxu0 0.0
    %403 = vmatpush1.msra.mxu0 0.0
    %404 = vmatprep.subr.mxu0 0.0
    %405 = vmatpush1.msra.mxu0 %v62
    %406 = vmatprep.subr.mxu0 0.0
    %407 = vmatpush1.msra.mxu0 %v61
    %408 = vmatprep.subr.mxu0 0.0
    %409 = vmatpush1.msra.mxu0 %v60
    %410 = vmatprep.subr.mxu0 0.0
    %411 = vmatpush1.msra.mxu0 %v59
    %412 = vmatprep.subr.mxu0 0.0
    %413 = vmatpush2.msra.mxu0 0.0
    %414 = vmatprep.subr.mxu0 0.0
    %415 = vmatpush2.msra.mxu0 0.0
    %416 = vmatprep.subr.mxu0 0.0
    %417 = vmatpush2.msra.mxu0 0.0
    %418 = vmatprep.subr.mxu0 0.0
    %419 = vmatpush2.msra.mxu0 0.0
    %420 = vmatprep.subr.mxu0 0.0
    %421 = vmatpush2.msra.mxu0 0.0
    %422 = vmatprep.subr.mxu0 0.0
    %423 = vmatpush2.msra.mxu0 0.0
    %424 = vmatprep.subr.mxu0 0.0
    %425 = vmatpush2.msra.mxu0 0.0
    %426 = vmatprep.subr.mxu0 0.0
    %427 = vmatpush2.msra.mxu0 0.0
    %428 = vmatprep.subr.mxu0 0.0
    %429 = vmatpush2.msra.mxu0 0.0
    %430 = vmatprep.subr.mxu0 0.0
    %431 = vmatpush2.msra.mxu0 0.0
    %432 = vmatprep.subr.mxu0 0.0
    %433 = vmatpush2.msra.mxu0 0.0
    %434 = vmatprep.subr.mxu0 0.0
    %435 = vmatpush2.msra.mxu0 0.0
    %436 = vmatprep.subr.mxu0 0.0
    %437 = vmatpush2.msra.mxu0 0.0
    %438 = vmatprep.subr.mxu0 0.0
    %439 = vmatpush2.msra.mxu0 0.0
    %440 = vmatprep.subr.mxu0 0.0
    %441 = vmatpush2.msra.mxu0 0.0
    %442 = vmatprep.subr.mxu0 0.0
    %443 = vmatpush2.msra.mxu0 0.0
    %444 = vmatprep.mubr.f32.mxu0 0.0
    %445 = vmatmul.mubr.f32.gmra.mxu0 %v378
    %v446 = vpop.f32.mrf.mxu0
    %v447 = vadd.f32 0.0, %v446
    %v448 = vpop.f32.mrf.mxu0
    %449 = vdwg.mxu0
    %v450 = vadd.f32 %v376, %v447
    %v451 = vtanh.pop %v450
    %v452 = vadd.f32 %v374, %v451
    %s453 = scalar_lea.vmem [#allocation2], 10
    %v454 = vld [vmem:[%s453] sm:$0x3]
    %v456 = vsel %vm64, %v451, 0
    %458 = vmatprep.subr.mxu0 0.0
    %459 = vmatpush1.msra.mxu0 0.0
    %460 = vmatprep.subr.mxu0 0.0
    %461 = vmatpush1.msra.mxu0 0.0
    %462 = vmatprep.subr.mxu0 0.0
    %463 = vmatpush1.msra.mxu0 0.0
    %464 = vmatprep.subr.mxu0 0.0
    %465 = vmatpush1.msra.mxu0 0.0
    %466 = vmatprep.subr.mxu0 0.0
    %467 = vmatpush1.msra.mxu0 0.0
    %468 = vmatprep.subr.mxu0 0.0
    %469 = vmatpush1.msra.mxu0 0.0
    %470 = vmatprep.subr.mxu0 0.0
    %471 = vmatpush1.msra.mxu0 0.0
    %472 = vmatprep.subr.mxu0 0.0
    %473 = vmatpush1.msra.mxu0 0.0
    %474 = vmatprep.subr.mxu0 0.0
    %475 = vmatpush1.msra.mxu0 0.0
    %476 = vmatprep.subr.mxu0 0.0
    %477 = vmatpush1.msra.mxu0 0.0
    %478 = vmatprep.subr.mxu0 0.0
    %479 = vmatpush1.msra.mxu0 0.0
    %480 = vmatprep.subr.mxu0 0.0
    %481 = vmatpush1.msra.mxu0 0.0
    %482 = vmatprep.subr.mxu0 0.0
    %483 = vmatpush1.msra.mxu0 %v62
    %484 = vmatprep.subr.mxu0 0.0
    %485 = vmatpush1.msra.mxu0 %v61
    %486 = vmatprep.subr.mxu0 0.0
    %487 = vmatpush1.msra.mxu0 %v60
    %488 = vmatprep.subr.mxu0 0.0
    %489 = vmatpush1.msra.mxu0 %v59
    %490 = vmatprep.subr.mxu0 0.0
    %491 = vmatpush2.msra.mxu0 0.0
    %492 = vmatprep.subr.mxu0 0.0
    %493 = vmatpush2.msra.mxu0 0.0
    %494 = vmatprep.subr.mxu0 0.0
    %495 = vmatpush2.msra.mxu0 0.0
    %496 = vmatprep.subr.mxu0 0.0
    %497 = vmatpush2.msra.mxu0 0.0
    %498 = vmatprep.subr.mxu0 0.0
    %499 = vmatpush2.msra.mxu0 0.0
    %500 = vmatprep.subr.mxu0 0.0
    %501 = vmatpush2.msra.mxu0 0.0
    %502 = vmatprep.subr.mxu0 0.0
    %503 = vmatpush2.msra.mxu0 0.0
    %504 = vmatprep.subr.mxu0 0.0
    %505 = vmatpush2.msra.mxu0 0.0
    %506 = vmatprep.subr.mxu0 0.0
    %507 = vmatpush2.msra.mxu0 0.0
    %508 = vmatprep.subr.mxu0 0.0
    %509 = vmatpush2.msra.mxu0 0.0
    %510 = vmatprep.subr.mxu0 0.0
    %511 = vmatpush2.msra.mxu0 0.0
    %512 = vmatprep.subr.mxu0 0.0
    %513 = vmatpush2.msra.mxu0 0.0
    %514 = vmatprep.subr.mxu0 0.0
    %515 = vmatpush2.msra.mxu0 0.0
    %516 = vmatprep.subr.mxu0 0.0
    %517 = vmatpush2.msra.mxu0 0.0
    %518 = vmatprep.subr.mxu0 0.0
    %519 = vmatpush2.msra.mxu0 0.0
    %520 = vmatprep.subr.mxu0 0.0
    %521 = vmatpush2.msra.mxu0 0.0
    %522 = vmatprep.mubr.f32.mxu0 0.0
    %523 = vmatmul.mubr.f32.gmra.mxu0 %v456
    %v524 = vpop.f32.mrf.mxu0
    %v525 = vadd.f32 0.0, %v524
    %v526 = vpop.f32.mrf.mxu0
    %527 = vdwg.mxu0
    %v528 = vadd.f32 %v454, %v525
    %v529 = vtanh.pop %v528
    %v530 = vadd.f32 %v452, %v529
    %s531 = scalar_lea.vmem [#allocation2], 12
    %v532 = vld [vmem:[%s531] sm:$0x3]
    %v534 = vsel %vm64, %v529, 0
    %536 = vmatprep.subr.mxu0 0.0
    %537 = vmatpush1.msra.mxu0 0.0
    %538 = vmatprep.subr.mxu0 0.0
    %539 = vmatpush1.msra.mxu0 0.0
    %540 = vmatprep.subr.mxu0 0.0
    %541 = vmatpush1.msra.mxu0 0.0
    %542 = vmatprep.subr.mxu0 0.0
    %543 = vmatpush1.msra.mxu0 0.0
    %544 = vmatprep.subr.mxu0 0.0
    %545 = vmatpush1.msra.mxu0 0.0
    %546 = vmatprep.subr.mxu0 0.0
    %547 = vmatpush1.msra.mxu0 0.0
    %548 = vmatprep.subr.mxu0 0.0
    %549 = vmatpush1.msra.mxu0 0.0
    %550 = vmatprep.subr.mxu0 0.0
    %551 = vmatpush1.msra.mxu0 0.0
    %552 = vmatprep.subr.mxu0 0.0
    %553 = vmatpush1.msra.mxu0 0.0
    %554 = vmatprep.subr.mxu0 0.0
    %555 = vmatpush1.msra.mxu0 0.0
    %556 = vmatprep.subr.mxu0 0.0
    %557 = vmatpush1.msra.mxu0 0.0
    %558 = vmatprep.subr.mxu0 0.0
    %559 = vmatpush1.msra.mxu0 0.0
    %560 = vmatprep.subr.mxu0 0.0
    %561 = vmatpush1.msra.mxu0 %v62
    %562 = vmatprep.subr.mxu0 0.0
    %563 = vmatpush1.msra.mxu0 %v61
    %564 = vmatprep.subr.mxu0 0.0
    %565 = vmatpush1.msra.mxu0 %v60
    %566 = vmatprep.subr.mxu0 0.0
    %567 = vmatpush1.msra.mxu0 %v59
    %568 = vmatprep.subr.mxu0 0.0
    %569 = vmatpush2.msra.mxu0 0.0
    %570 = vmatprep.subr.mxu0 0.0
    %571 = vmatpush2.msra.mxu0 0.0
    %572 = vmatprep.subr.mxu0 0.0
    %573 = vmatpush2.msra.mxu0 0.0
    %574 = vmatprep.subr.mxu0 0.0
    %575 = vmatpush2.msra.mxu0 0.0
    %576 = vmatprep.subr.mxu0 0.0
    %577 = vmatpush2.msra.mxu0 0.0
    %578 = vmatprep.subr.mxu0 0.0
    %579 = vmatpush2.msra.mxu0 0.0
    %580 = vmatprep.subr.mxu0 0.0
    %581 = vmatpush2.msra.mxu0 0.0
    %582 = vmatprep.subr.mxu0 0.0
    %583 = vmatpush2.msra.mxu0 0.0
    %584 = vmatprep.subr.mxu0 0.0
    %585 = vmatpush2.msra.mxu0 0.0
    %586 = vmatprep.subr.mxu0 0.0
    %587 = vmatpush2.msra.mxu0 0.0
    %588 = vmatprep.subr.mxu0 0.0
    %589 = vmatpush2.msra.mxu0 0.0
    %590 = vmatprep.subr.mxu0 0.0
    %591 = vmatpush2.msra.mxu0 0.0
    %592 = vmatprep.subr.mxu0 0.0
    %593 = vmatpush2.msra.mxu0 0.0
    %594 = vmatprep.subr.mxu0 0.0
    %595 = vmatpush2.msra.mxu0 0.0
    %596 = vmatprep.subr.mxu0 0.0
    %597 = vmatpush2.msra.mxu0 0.0
    %598 = vmatprep.subr.mxu0 0.0
    %599 = vmatpush2.msra.mxu0 0.0
    %600 = vmatprep.mubr.f32.mxu0 0.0
    %601 = vmatmul.mubr.f32.gmra.mxu0 %v534
    %v602 = vpop.f32.mrf.mxu0
    %v603 = vadd.f32 0.0, %v602
    %v604 = vpop.f32.mrf.mxu0
    %605 = vdwg.mxu0
    %v606 = vadd.f32 %v532, %v603
    %v607 = vtanh.pop %v606
    %v608 = vadd.f32 %v530, %v607
    %s609 = scalar_lea.vmem [#allocation2], 14
    %v610 = vld [vmem:[%s609] sm:$0x3]
    %v612 = vsel %vm64, %v607, 0
    %614 = vmatprep.subr.mxu0 0.0
    %615 = vmatpush1.msra.mxu0 0.0
    %616 = vmatprep.subr.mxu0 0.0
    %617 = vmatpush1.msra.mxu0 0.0
    %618 = vmatprep.subr.mxu0 0.0
    %619 = vmatpush1.msra.mxu0 0.0
    %620 = vmatprep.subr.mxu0 0.0
    %621 = vmatpush1.msra.mxu0 0.0
    %622 = vmatprep.subr.mxu0 0.0
    %623 = vmatpush1.msra.mxu0 0.0
    %624 = vmatprep.subr.mxu0 0.0
    %625 = vmatpush1.msra.mxu0 0.0
    %626 = vmatprep.subr.mxu0 0.0
    %627 = vmatpush1.msra.mxu0 0.0
    %628 = vmatprep.subr.mxu0 0.0
    %629 = vmatpush1.msra.mxu0 0.0
    %630 = vmatprep.subr.mxu0 0.0
    %631 = vmatpush1.msra.mxu0 0.0
    %632 = vmatprep.subr.mxu0 0.0
    %633 = vmatpush1.msra.mxu0 0.0
    %634 = vmatprep.subr.mxu0 0.0
    %635 = vmatpush1.msra.mxu0 0.0
    %636 = vmatprep.subr.mxu0 0.0
    %637 = vmatpush1.msra.mxu0 0.0
    %638 = vmatprep.subr.mxu0 0.0
    %639 = vmatpush1.msra.mxu0 %v62
    %640 = vmatprep.subr.mxu0 0.0
    %641 = vmatpush1.msra.mxu0 %v61
    %642 = vmatprep.subr.mxu0 0.0
    %643 = vmatpush1.msra.mxu0 %v60
    %644 = vmatprep.subr.mxu0 0.0
    %645 = vmatpush1.msra.mxu0 %v59
    %646 = vmatprep.subr.mxu0 0.0
    %647 = vmatpush2.msra.mxu0 0.0
    %648 = vmatprep.subr.mxu0 0.0
    %649 = vmatpush2.msra.mxu0 0.0
    %650 = vmatprep.subr.mxu0 0.0
    %651 = vmatpush2.msra.mxu0 0.0
    %652 = vmatprep.subr.mxu0 0.0
    %653 = vmatpush2.msra.mxu0 0.0
    %654 = vmatprep.subr.mxu0 0.0
    %655 = vmatpush2.msra.mxu0 0.0
    %656 = vmatprep.subr.mxu0 0.0
    %657 = vmatpush2.msra.mxu0 0.0
    %658 = vmatprep.subr.mxu0 0.0
    %659 = vmatpush2.msra.mxu0 0.0
    %660 = vmatprep.subr.mxu0 0.0
    %661 = vmatpush2.msra.mxu0 0.0
    %662 = vmatprep.subr.mxu0 0.0
    %663 = vmatpush2.msra.mxu0 0.0
    %664 = vmatprep.subr.mxu0 0.0
    %665 = vmatpush2.msra.mxu0 0.0
    %666 = vmatprep.subr.mxu0 0.0
    %667 = vmatpush2.msra.mxu0 0.0
    %668 = vmatprep.subr.mxu0 0.0
    %669 = vmatpush2.msra.mxu0 0.0
    %670 = vmatprep.subr.mxu0 0.0
    %671 = vmatpush2.msra.mxu0 0.0
    %672 = vmatprep.subr.mxu0 0.0
    %673 = vmatpush2.msra.mxu0 0.0
    %674 = vmatprep.subr.mxu0 0.0
    %675 = vmatpush2.msra.mxu0 0.0
    %676 = vmatprep.subr.mxu0 0.0
    %677 = vmatpush2.msra.mxu0 0.0
    %678 = vmatprep.mubr.f32.mxu0 0.0
    %679 = vmatmul.mubr.f32.gmra.mxu0 %v612
    %v680 = vpop.f32.mrf.mxu0
    %v681 = vadd.f32 0.0, %v680
    %v682 = vpop.f32.mrf.mxu0
    %683 = vdwg.mxu0
    %v684 = vadd.f32 %v610, %v681
    %v685 = vtanh.pop %v684
    %v686 = vadd.f32 %v608, %v685
    %v687 = vld [vmem:[#allocation7] sm:$0xff]
    %v688 = vld [vmem:[#allocation7 + $0x8] sm:$0xff]
    %v689 = vld [vmem:[#allocation7 + $0x10] sm:$0xff]
    %v690 = vld [vmem:[#allocation7 + $0x18] sm:$0xff]
    %v691 = vld [vmem:[%s3] sm:$0x1]
    %v692 = vmul.f32 %v691, 8.0
    %v694 = vlaneseq
    %v695 = vshrl.u32 %v694, 7
    %v696 = vsub.s32 0, %v695
    %v697 = vrot.slane %v692, %v696
    %v700 = vsel %vm64, %v686, 0
    %702 = vmatprep.subr.mxu0 0.0
    %703 = vmatpush1.msra.mxu0 0.0
    %704 = vmatprep.subr.mxu0 0.0
    %705 = vmatpush1.msra.mxu0 0.0
    %706 = vmatprep.subr.mxu0 0.0
    %707 = vmatpush1.msra.mxu0 0.0
    %708 = vmatprep.subr.mxu0 0.0
    %709 = vmatpush1.msra.mxu0 0.0
    %710 = vmatprep.subr.mxu0 0.0
    %711 = vmatpush1.msra.mxu0 0.0
    %712 = vmatprep.subr.mxu0 0.0
    %713 = vmatpush1.msra.mxu0 0.0
    %714 = vmatprep.subr.mxu0 0.0
    %715 = vmatpush1.msra.mxu0 0.0
    %716 = vmatprep.subr.mxu0 0.0
    %717 = vmatpush1.msra.mxu0 0.0
    %718 = vmatprep.subr.mxu0 0.0
    %719 = vmatpush1.msra.mxu0 0.0
    %720 = vmatprep.subr.mxu0 0.0
    %721 = vmatpush1.msra.mxu0 0.0
    %722 = vmatprep.subr.mxu0 0.0
    %723 = vmatpush1.msra.mxu0 0.0
    %724 = vmatprep.subr.mxu0 0.0
    %725 = vmatpush1.msra.mxu0 0.0
    %726 = vmatprep.subr.mxu0 0.0
    %727 = vmatpush1.msra.mxu0 %v690
    %728 = vmatprep.subr.mxu0 0.0
    %729 = vmatpush1.msra.mxu0 %v689
    %730 = vmatprep.subr.mxu0 0.0
    %731 = vmatpush1.msra.mxu0 %v688
    %732 = vmatprep.subr.mxu0 0.0
    %733 = vmatpush1.msra.mxu0 %v687
    %734 = vmatprep.subr.mxu0 0.0
    %735 = vmatpush2.msra.mxu0 0.0
    %736 = vmatprep.subr.mxu0 0.0
    %737 = vmatpush2.msra.mxu0 0.0
    %738 = vmatprep.subr.mxu0 0.0
    %739 = vmatpush2.msra.mxu0 0.0
    %740 = vmatprep.subr.mxu0 0.0
    %741 = vmatpush2.msra.mxu0 0.0
    %742 = vmatprep.subr.mxu0 0.0
    %743 = vmatpush2.msra.mxu0 0.0
    %744 = vmatprep.subr.mxu0 0.0
    %745 = vmatpush2.msra.mxu0 0.0
    %746 = vmatprep.subr.mxu0 0.0
    %747 = vmatpush2.msra.mxu0 0.0
    %748 = vmatprep.subr.mxu0 0.0
    %749 = vmatpush2.msra.mxu0 0.0
    %750 = vmatprep.subr.mxu0 0.0
    %751 = vmatpush2.msra.mxu0 0.0
    %752 = vmatprep.subr.mxu0 0.0
    %753 = vmatpush2.msra.mxu0 0.0
    %754 = vmatprep.subr.mxu0 0.0
    %755 = vmatpush2.msra.mxu0 0.0
    %756 = vmatprep.subr.mxu0 0.0
    %757 = vmatpush2.msra.mxu0 0.0
    %758 = vmatprep.subr.mxu0 0.0
    %759 = vmatpush2.msra.mxu0 0.0
    %760 = vmatprep.subr.mxu0 0.0
    %761 = vmatpush2.msra.mxu0 0.0
    %762 = vmatprep.subr.mxu0 0.0
    %763 = vmatpush2.msra.mxu0 0.0
    %764 = vmatprep.subr.mxu0 0.0
    %765 = vmatpush2.msra.mxu0 0.0
    %766 = vmatprep.mubr.f32.mxu0 0.0
    %767 = vmatmul.mubr.f32.gmra.mxu0 %v700
    %v768 = vpop.f32.mrf.mxu0
    %v769 = vadd.f32 %v697, %v768
    %v770 = vpop.f32.mrf.mxu0
    %771 = vdwg.mxu0
    %v772 = vlaneseq
    %v773 = vand.u32 %v772, 127
    %vm774 = vcmp.lt.s32.totalorder %v773, 5
    %v775 = vsel %vm774, %v769, -1e+30
    %vm776 = vcmask 1041408
    %v777 = vsel %vm776, %v775, -inf
    %778 = vmax.xlane.f32.xlu0 %v777
    %v779 = vpop.xlane.xlu0 %778
    %v780 = vsub.f32 %v775, %v779
    %v781 = vmul.f32 %v780, 1.442695
    %v782 = vpow.pop %v781
    %v783 = vsel %vm776, %v782, 0.0
    %784 = vadd.xlane.f32.xlu0 %v783
    %v785 = vpop.xlane.xlu0 %784
    %v786 = vlog2.pop %v785
    %v787 = vmul.f32 %v786, 0.6931472
    %v788 = vadd.f32 %v787, %v779
    %v789 = vsub.f32 %v775, %v788
    %790 = vst [vmem:[#allocation8] sm:$0x3] %v789
    // Predicated region
    $region30: #{tpu_custom_call.1} parent=1 // pred_check
      _
    $region31: #{tpu_custom_call.1} parent=1 // pred_check_branch
      %792 = sbr.rel (0) target = $region33
    $region32: #{tpu_custom_call.1} parent=1 // pred_region
      %s794 = ssub.s32 32, 32
      %795 = vsyncadd [#allocation4], %s794
      %s797 = sshll.u32 [#allocation8], 4
      %s798 = int_to_ptr.vmem [resolvable:$true] %s797
      %800 = dma.vmem_to_hbm [thread:$0]  %s798, 32, %s4, [#allocation4]
    $region33: #{tpu_custom_call.1} parent=1 // pred_fallthru
      _
    // Predicated region
    $region34: #{tpu_custom_call.1} parent=1 // pred_check
      _
    $region35: #{tpu_custom_call.1} parent=1 // pred_check_branch
      %802 = sbr.rel (0) target = $region37
    $region36: #{tpu_custom_call.1} parent=1 // pred_region
      %803 = dma.done [#allocation4], 32
    $region37: #{tpu_custom_call.1} parent=1 // pred_fallthru
      _
    %804 = vsyncpa [#allocation3], 1
    %805 = vsyncpa [#allocation6], 1
    %806 = vsyncpa [#allocation4], 1

</llo_original>
